<compile_context>
chip_gen: v7x
topology: tpu7x:2x2x1
jax: 0.10.0
libtpu: 0.0.40
codegen_flags: <defaults>
</compile_context>

<pallas_src>
import jax
import jax.numpy as jnp
from jax.experimental import pallas as pl
from jax.experimental.pallas import tpu as pltpu


def _round_up(x: int, m: int) -> int:
    return ((x + m - 1) // m) * m


def _pooled_logits_kernel(x_ref, w_ref, out_ref, acc_ref):
    # x_ref:   (B_TILE, T_TILE, D_eff)  folded encoder-output tile (any float dtype)
    # w_ref:   (D_eff, A_PAD) f32       fc weight, pre-transposed & k-tiled, zero-padded cols
    # out_ref: (1, B_TILE, A_PAD) f32   partial logits (no bias) for this (split, b) tile
    # acc_ref: (B_TILE, D_eff) f32      pooled-sum accumulator (VMEM scratch)
    t = pl.program_id(2)

    @pl.when(t == 0)
    def _():
        acc_ref[...] = jnp.zeros_like(acc_ref)

    # Streaming T reduction: VPU adds that overlap the next block's DMA.
    acc_ref[...] += jnp.sum(x_ref[...].astype(jnp.float32), axis=1)

    # TODO(synk): dropout_rate defaults to 0.0 (eval/identity), so dropout is omitted.

    @pl.when(t == pl.num_programs(2) - 1)
    def _():
        # Tiny MXU matmul only on the last T step of this split: (B_TILE, D_eff) x (D_eff, A_PAD).
        out_ref[0] = jnp.dot(acc_ref[...], w_ref[...],
                             preferred_element_type=jnp.float32)


def domain_classifier_loss(encoder_output, true_domain, weight, bias):
    """encoder_output: (B, T, D) float; true_domain: (B,) int;
    weight: (A, D) torch nn.Linear layout; bias: (A,).
    Returns scalar f32 mean cross-entropy loss (matches DomainClassifier.forward)."""
    B, T, D = encoder_output.shape
    A = weight.shape[0]
    itemsize = jnp.dtype(encoder_output.dtype).itemsize

    # ---- class dim padded to one full 128-lane vreg ---------------------------------
    A_PAD = max(128, _round_up(A, 128))

    # ---- lane folding: (B, T, D) -> (B, T/k, k*D) so streamed vregs are lane-dense ---
    k = (128 // D) if (D < 128 and 128 % D == 0) else 1
    D_eff = k * D
    lane_D = _round_up(D_eff, 128)        # lane-padded width actually occupied in VMEM
    Tg = -(-T // k)                       # folded time-groups (ceil)

    # fc weight: transpose once to (D, A_PAD), zero-pad fake classes, tile k times along
    # rows so folded_pooled @ w_fold == pooled @ weight.T exactly.
    w_t = jnp.zeros((D, A_PAD), jnp.float32).at[:, :A].set(weight.astype(jnp.float32).T)
    w_fold = jnp.tile(w_t, (k, 1))        # (D_eff, A_PAD)

    # ---- batch tiling -----------------------------------------------------------------
    if B <= 8:
        B_TILE, B_pad = B, B
    else:
        B_TILE, B_pad = 8, _round_up(B, 8)
    nb = B_pad // B_TILE

    # ---- time tiling: size blocks from the LANE-PADDED VMEM footprint ------------------
    # ~12 MiB per x buffer for f32 (8 MiB for narrower dtypes, leaving room for the f32
    # cast temp); double-buffered this keeps per-grid-step overhead (<~0.35 us) under ~10%
    # of the DMA time on v6e/v7x while fitting v7x's 64 MiB physical VMEM.
    target_bytes = (12 << 20) if itemsize >= 4 else (8 << 20)
    row_bytes = B_TILE * lane_D * itemsize            # one folded time-group row
    t_cap = max(8, (target_bytes // row_bytes) // 8 * 8)

    # Split the T stream across a leading "parallel" axis when there is only one B tile,
    # so both v7x TensorCores each stream half of HBM (extra grid step is harmless on
    # single-TC chips).
    n_split = 2 if (nb == 1 and Tg >= 64) else 1
    per_split = -(-Tg // n_split)
    nt = max(1, -(-per_split // t_cap))
    T_TILE = _round_up(-(-per_split // nt), 8)        # multiple of 8, <= t_cap
    Tg_pad = n_split * nt * T_TILE

    # ---- pad + fold the input (zero time/batch padding never changes the T-sum) --------
    x = encoder_output
    pad_B, pad_T = B_pad - B, Tg_pad * k - T
    if pad_B or pad_T:
        x = jnp.pad(x, ((0, pad_B), (0, pad_T), (0, 0)))
    x = x.reshape(B_pad, Tg_pad, D_eff)               # free bitcast when no padding needed

    # ---- explicit VMEM budget (lane/sublane padded, double-buffered) -------------------
    x_block_bytes = B_TILE * T_TILE * lane_D * itemsize
    cast_tmp_bytes = 0 if itemsize >= 4 else B_TILE * T_TILE * lane_D * 4
    w_block_bytes = _round_up(D_eff, 8) * A_PAD * 4
    out_block_bytes = _round_up(B_TILE, 8) * A_PAD * 4
    acc_bytes = _round_up(B_TILE, 8) * lane_D * 4
    vmem_need = (2 * x_block_bytes + cast_tmp_bytes + 2 * w_block_bytes
                 + 2 * out_block_bytes + acc_bytes + (2 << 20))
    vmem_limit = int(min(max(vmem_need, 16 << 20), 64 << 20))

    cost = pl.CostEstimate(
        flops=int(B_pad * Tg_pad * D_eff + 2 * n_split * B_pad * D_eff * A_PAD),
        transcendentals=0,
        bytes_accessed=int(B_pad * Tg_pad * D_eff * itemsize
                           + D_eff * A_PAD * 4
                           + n_split * B_pad * A_PAD * 4))

    partial = pl.pallas_call(
        _pooled_logits_kernel,
        out_shape=jax.ShapeDtypeStruct((n_split, B_pad, A_PAD), jnp.float32),
        grid_spec=pltpu.PrefetchScalarGridSpec(
            num_scalar_prefetch=0,
            grid=(n_split, nb, nt),
            in_specs=[
                pl.BlockSpec((B_TILE, T_TILE, D_eff),
                             lambda s, b, t: (b, s * nt + t, 0)),
                pl.BlockSpec((D_eff, A_PAD), lambda s, b, t: (0, 0)),
            ],
            out_specs=pl.BlockSpec((1, B_TILE, A_PAD),
                                   lambda s, b, t: (s, b, 0)),
            scratch_shapes=[pltpu.VMEM((B_TILE, D_eff), jnp.float32)],
        ),
        compiler_params=pltpu.CompilerParams(
            dimension_semantics=("parallel", "parallel", "arbitrary"),
            vmem_limit_bytes=vmem_limit),
        cost_estimate=cost,
    )(x, w_fold)

    # ---- tiny epilogue in plain XLA: combine split partials, add bias, cross-entropy ---
    logits = jnp.sum(partial, axis=0)[:B, :A] + bias.astype(jnp.float32)[None, :]
    logp = jax.nn.log_softmax(logits, axis=-1)
    tgt = true_domain.astype(jnp.int32)
    nll = -jnp.take_along_axis(logp, tgt[:, None], axis=1)[:, 0]
    return jnp.mean(nll)


if __name__ == "__main__":
    # Small shapes consistent with the module: B=2, Tmax=8, encoder_output_size=32, accent_num=4
    B, T, D, A = 2, 8, 32, 4
    key = jax.random.PRNGKey(0)
    k_x, k_w, k_b, k_t = jax.random.split(key, 4)

    encoder_output = jax.random.normal(k_x, (B, T, D), dtype=jnp.float32)
    true_domain = jax.random.randint(k_t, (B,), 0, A, dtype=jnp.int32)

    # Deterministic synthetic parameters for torch.nn.Linear(D, A) (torch (out, in) layout)
    weight = 0.1 * jax.random.normal(k_w, (A, D), dtype=jnp.float32)
    bias = 0.1 * jax.random.normal(k_b, (A,), dtype=jnp.float32)

    loss = domain_classifier_loss(encoder_output, true_domain, weight, bias)
    jax.block_until_ready(loss)

    # Pure-JAX reference check of the forward semantics
    pooled = encoder_output.sum(axis=1)
    logits = pooled @ weight.T + bias
    logp = jax.nn.log_softmax(logits, axis=-1)
    ref = -jnp.mean(logp[jnp.arange(B), true_domain])
    assert jnp.allclose(loss, ref, atol=1e-5, rtol=1e-5), (loss, ref)

    print("KERNEL_OK")
</pallas_src>

<mosaic_0001>
module attributes {stable_mosaic.version = 11 : i64} {
  func.func @_pooled_logits_kernel(%arg0: i32, %arg1: i32, %arg2: i32, %arg3: memref<2x8x128xf32, #tpu.memory_space<vmem>>, %arg4: memref<128x128xf32, #tpu.memory_space<vmem>>, %arg5: memref<1x2x128xf32, #tpu.memory_space<vmem>>, %arg6: memref<2x128xf32, #tpu.memory_space<vmem>>) attributes {dimension_semantics = [#tpu.dimension_semantics<parallel>, #tpu.dimension_semantics<parallel>, #tpu.dimension_semantics<arbitrary>], iteration_bounds = array<i64: 1, 1, 1>, scalar_prefetch = 0 : i64, scratch_operands = 1 : i64, tpu.core_type = #tpu.core_type<tc>, window_params = [{transform_indices = @transform_0, window_bounds = array<i64: 2, 8, 128>}, {pipeline_mode = #tpu.pipeline_mode<synchronous>, transform_indices = @transform_1, window_bounds = array<i64: 128, 128>}, {transform_indices = @transform_2, window_bounds = array<i64: 1, 2, 128>}]} {
    %c0_i32 = arith.constant 0 : i32
    %0 = arith.cmpi eq, %arg2, %c0_i32 : i32
    %1 = arith.extui %0 : i1 to i32
    %c0_i32_0 = arith.constant 0 : i32
    %2 = arith.cmpi ne, %1, %c0_i32_0 : i32
    scf.if %2 {
      %cst_9 = arith.constant 0.000000e+00 : f32
      %11 = vector.broadcast %cst_9 : f32 to vector<2x128xf32>
      %c0_10 = arith.constant 0 : index
      %c0_11 = arith.constant 0 : index
      %12 = vector.load %arg6[%c0_10, %c0_11] : memref<2x128xf32, #tpu.memory_space<vmem>>, vector<2x128xf32>
      tpu.vector_store %arg6[%c0_10, %c0_11], %11 {strides = array<i32>} : memref<2x128xf32, #tpu.memory_space<vmem>>, vector<2x128xf32>,
    } else {
    }
    %c0 = arith.constant 0 : index
    %c0_1 = arith.constant 0 : index
    %3 = vector.load %arg6[%c0, %c0_1] : memref<2x128xf32, #tpu.memory_space<vmem>>, vector<2x128xf32>
    %c0_2 = arith.constant 0 : index
    %c0_3 = arith.constant 0 : index
    %c0_4 = arith.constant 0 : index
    %4 = vector.load %arg3[%c0_2, %c0_3, %c0_4] : memref<2x8x128xf32, #tpu.memory_space<vmem>>, vector<2x8x128xf32>
    %cst = arith.constant dense<0.000000e+00> : vector<2x128xf32>
    %5 = vector.multi_reduction <add>, %4, %cst [1] : vector<2x8x128xf32> to vector<2x128xf32>
    %6 = arith.addf %3, %5 : vector<2x128xf32>
    %c0_5 = arith.constant 0 : index
    %c0_6 = arith.constant 0 : index
    %7 = vector.load %arg6[%c0_5, %c0_6] : memref<2x128xf32, #tpu.memory_space<vmem>>, vector<2x128xf32>
    tpu.vector_store %arg6[%c0_5, %c0_6], %6 {strides = array<i32>} : memref<2x128xf32, #tpu.memory_space<vmem>>, vector<2x128xf32>,
    %c0_i32_7 = arith.constant 0 : i32
    %8 = arith.cmpi eq, %arg2, %c0_i32_7 : i32
    %9 = arith.extui %8 : i1 to i32
    %c0_i32_8 = arith.constant 0 : i32
    %10 = arith.cmpi ne, %9, %c0_i32_8 : i32
    scf.if %10 {
      %c0_9 = arith.constant 0 : index
      %c0_10 = arith.constant 0 : index
      %11 = vector.load %arg6[%c0_9, %c0_10] : memref<2x128xf32, #tpu.memory_space<vmem>>, vector<2x128xf32>
      %c0_11 = arith.constant 0 : index
      %c0_12 = arith.constant 0 : index
      %12 = vector.load %arg4[%c0_11, %c0_12] : memref<128x128xf32, #tpu.memory_space<vmem>>, vector<128x128xf32>
      %cst_13 = arith.constant dense<0.000000e+00> : vector<2x128xf32>
      %13 = tpu.matmul %11, %12, %cst_13 {dimension_numbers = #tpu.dot_dimension_numbers<[1], [0], [0], [1], [0, 0, 1, 1], [], []>} : vector<2x128xf32>, vector<128x128xf32>, vector<2x128xf32> -> vector<2x128xf32>
      %c0_14 = arith.constant 0 : index
      %c0_15 = arith.constant 0 : index
      %c0_16 = arith.constant 0 : index
      %14 = vector.load %arg5[%c0_14, %c0_15, %c0_16] : memref<1x2x128xf32, #tpu.memory_space<vmem>>, vector<1x2x128xf32>
      %15 = vector.shape_cast %14 : vector<1x2x128xf32> to vector<2x128xf32>
      %16 = vector.shape_cast %13 : vector<2x128xf32> to vector<1x2x128xf32>
      tpu.vector_store %arg5[%c0_14, %c0_15, %c0_16], %16 {strides = array<i32>} : memref<1x2x128xf32, #tpu.memory_space<vmem>>, vector<1x2x128xf32>,
    } else {
    }
    return
  }
  func.func @transform_0(%arg0: i32, %arg1: i32, %arg2: i32) -> (i32, i32, i32) {
    %c1_i32 = arith.constant 1 : i32
    %0 = arith.muli %arg0, %c1_i32 : i32
    %1 = arith.addi %0, %arg2 : i32
    %c0_i32 = arith.constant 0 : i32
    %c0_i32_0 = arith.constant 0 : i32
    return %arg1, %1, %c0_i32 : i32, i32, i32
  }
  func.func @transform_1(%arg0: i32, %arg1: i32, %arg2: i32) -> (i32, i32) {
    %c0_i32 = arith.constant 0 : i32
    %c0_i32_0 = arith.constant 0 : i32
    %c0_i32_1 = arith.constant 0 : i32
    return %c0_i32, %c0_i32_0 : i32, i32
  }
  func.func @transform_2(%arg0: i32, %arg1: i32, %arg2: i32) -> (i32, i32, i32) {
    %c0_i32 = arith.constant 0 : i32
    %c0_i32_0 = arith.constant 0 : i32
    return %arg0, %arg1, %c0_i32 : i32, i32, i32
  }
}

</mosaic_0001>

<llo_original>
// kernel: tpu_custom_call.1
$region0: #{tpu_custom_call.1}
  #allocation0 [shape = 'u32[]', space=smem, size = 0x4, offset = 0x4, fixed_abs, tag = 'smem constant byte address 0x4 - core index']
  #allocation1 [shape = 'u32[144,128]{1,0:T(1,128)}', space=vmem, size = 0x12000, scoped, tag = 'internal scratch']
  #allocation2 [shape = 'f32[2,128]{1,0:T(2,128)}', space=vmem, size = 0x400, scoped, tag = 'scratch operand']
  %s0 = inlined_call_operand.hbm [shape: f32[2,8,128], index: 0, kind: input, shape index: {}]
  %s1 = inlined_call_operand.hbm [shape: f32[128,128], index: 1, kind: input, shape index: {}]
  %s2 = inlined_call_operand.hbm [shape: f32[1,2,128], index: 2, kind: output, shape index: {}]
  %s3 = sld [smem:[#allocation0]]
  $region34: #{tpu_custom_call.1} parent=0
    _
  %s5 = ssub.s32 1, %s3
  %s6 = scalar_select 0, %s5, %s3
  $region1: #{tpu_custom_call.1} parent=0
    #allocation3 [shape = 'u8[8192]{0}', space=vmem, size = 0x2000, scoped, tag = 'input window, operand 0, single buffered']
    #allocation4 [shape = 's32[1]{0}', space=sflag, size = 0x4, scoped, tag = 'scoped memory for tpu_custom_call.1']
    #allocation5 [shape = 's32[1]{0}', space=sflag, size = 0x4, scoped, tag = 'scoped memory for tpu_custom_call.1']
    #allocation6 [shape = 'u8[65536]{0}', space=vmem, size = 0x10000, scoped, tag = 'input window, operand 1, single buffered']
    #allocation7 [shape = 's32[1]{0}', space=sflag, size = 0x4, scoped, tag = 'scoped memory for tpu_custom_call.1']
    #allocation8 [shape = 'u8[1024]{0}', space=vmem, size = 0x400, scoped, tag = 'output window, operand 0, single buffered']
    %7 = vsyncpa [#allocation4], 0
    %8 = vsyncpa [#allocation7], 0
    %9 = vsyncpa [#allocation5], 0
    // Predicated region
    $region2: #{tpu_custom_call.1} parent=1 // pred_check
      _
    $region3: #{tpu_custom_call.1} parent=1 // pred_check_branch
      %11 = sbr.rel (0) target = $region5
    $region4: #{tpu_custom_call.1} parent=1 // pred_region
      %s12 = sadd.s32 0, 0
      %s14 = ssub.s32 256, 256
      %15 = vsyncadd [#allocation4], %s14
      %s16 = smul.addr %s12, 128
      %s17 = scalar_lea.hbm %s0, %s16
      %s18 = sshll.u32 [#allocation3], 4
      %s19 = int_to_ptr.vmem [resolvable:$true] %s18
      %24 = dma.hbm_to_vmem [thread:$0]  %s17, 256, %s19, [#allocation4], 128, 128, 8
    $region5: #{tpu_custom_call.1} parent=1 // pred_fallthru
      _
    // Predicated region
    $region6: #{tpu_custom_call.1} parent=1 // pred_check
      _
    $region7: #{tpu_custom_call.1} parent=1 // pred_check_branch
      %26 = sbr.rel (0) target = $region9
    $region8: #{tpu_custom_call.1} parent=1 // pred_region
      %s28 = ssub.s32 2048, 2048
      %29 = vsyncadd [#allocation7], %s28
      %s30 = sshll.u32 [#allocation6], 4
      %s31 = int_to_ptr.vmem [resolvable:$true] %s30
      %36 = dma.hbm_to_vmem [thread:$0]  %s1, 2048, %s31, [#allocation7], 128, 128, 8
    $region9: #{tpu_custom_call.1} parent=1 // pred_fallthru
      _
    // Predicated region
    $region10: #{tpu_custom_call.1} parent=1 // pred_check
      _
    $region11: #{tpu_custom_call.1} parent=1 // pred_check_branch
      %38 = sbr.rel (0) target = $region13
    $region12: #{tpu_custom_call.1} parent=1 // pred_region
      %39 = dma.done [#allocation4], 256
    $region13: #{tpu_custom_call.1} parent=1 // pred_fallthru
      _
    // Predicated region
    $region14: #{tpu_custom_call.1} parent=1 // pred_check
      _
    $region15: #{tpu_custom_call.1} parent=1 // pred_check_branch
      %41 = sbr.rel (0) target = $region17
    $region16: #{tpu_custom_call.1} parent=1 // pred_region
      %42 = dma.done [#allocation7], 2048
    $region17: #{tpu_custom_call.1} parent=1 // pred_fallthru
      _
    %s43 = sadd.s32 0, 0
    %p44 = scmp.eq.s32.totalorder 0, 0
    // Predicated region
    $region18: #{tpu_custom_call.1} parent=1 // pred_check
      %p45 = pneg %p44
    $region19: #{tpu_custom_call.1} parent=1 // pred_check_branch
      %47 = sbr.rel (%p45) target = $region21
    $region20: #{tpu_custom_call.1} parent=1 // pred_region
      %48 = vst [vmem:[#allocation2] sm:$0x3] 0.0
    $region21: #{tpu_custom_call.1} parent=1 // pred_fallthru
      _
    %v49 = vld [vmem:[#allocation2] sm:$0x3]
    %v50 = vld [vmem:[#allocation3] sm:$0xff]
    %v51 = vld [vmem:[#allocation3 + $0x8] sm:$0xff]
    %v52 = vrot.slane %v50, 4
    %v53 = vadd.f32 %v50, %v52
    %v54 = vrot.slane %v53, 2
    %v55 = vadd.f32 %v53, %v54
    %v56 = vrot.slane %v55, 1
    %v57 = vadd.f32 %v55, %v56
    %v58 = vrot.slane %v51, 4
    %v59 = vadd.f32 %v51, %v58
    %v60 = vrot.slane %v59, 2
    %v61 = vadd.f32 %v59, %v60
    %v62 = vrot.slane %v61, 1
    %v63 = vadd.f32 %v61, %v62
    %vm66 = vcmask 1041409
    %v67 = vsel %vm66, %v63, %v57
    %v69 = vadd.f32 %v49, %v67
    %70 = vst [vmem:[#allocation2] sm:$0x3] %v69
    // Predicated region
    $region22: #{tpu_custom_call.1} parent=1 // pred_check
      %p71 = pneg %p44
    $region23: #{tpu_custom_call.1} parent=1 // pred_check_branch
      %73 = sbr.rel (%p71) target = $region25
    $region24: #{tpu_custom_call.1} parent=1 // pred_region
      %v74 = vld [vmem:[#allocation2] sm:$0x3]
      %v75 = vld [vmem:[#allocation6] sm:$0xff]
      %v76 = vld [vmem:[#allocation6 + $0x8] sm:$0xff]
      %v77 = vld [vmem:[#allocation6 + $0x10] sm:$0xff]
      %v78 = vld [vmem:[#allocation6 + $0x18] sm:$0xff]
      %v79 = vld [vmem:[#allocation6 + $0x20] sm:$0xff]
      %v80 = vld [vmem:[#allocation6 + $0x28] sm:$0xff]
      %v81 = vld [vmem:[#allocation6 + $0x30] sm:$0xff]
      %v82 = vld [vmem:[#allocation6 + $0x38] sm:$0xff]
      %v83 = vld [vmem:[#allocation6 + $0x40] sm:$0xff]
      %v84 = vld [vmem:[#allocation6 + $0x48] sm:$0xff]
      %v85 = vld [vmem:[#allocation6 + $0x50] sm:$0xff]
      %v86 = vld [vmem:[#allocation6 + $0x58] sm:$0xff]
      %v87 = vld [vmem:[#allocation6 + $0x60] sm:$0xff]
      %v88 = vld [vmem:[#allocation6 + $0x68] sm:$0xff]
      %v89 = vld [vmem:[#allocation6 + $0x70] sm:$0xff]
      %v90 = vld [vmem:[#allocation6 + $0x78] sm:$0xff]
      %91 = vmatprep.subr.mxu0 0.0
      %92 = vmatpush1.msra.mxu0 %v75
      %93 = vmatprep.subr.mxu0 0.0
      %94 = vmatpush1.msra.mxu0 %v76
      %95 = vmatprep.subr.mxu0 0.0
      %96 = vmatpush1.msra.mxu0 %v77
      %97 = vmatprep.subr.mxu0 0.0
      %98 = vmatpush1.msra.mxu0 %v78
      %99 = vmatprep.subr.mxu0 0.0
      %100 = vmatpush1.msra.mxu0 %v79
      %101 = vmatprep.subr.mxu0 0.0
      %102 = vmatpush1.msra.mxu0 %v80
      %103 = vmatprep.subr.mxu0 0.0
      %104 = vmatpush1.msra.mxu0 %v81
      %105 = vmatprep.subr.mxu0 0.0
      %106 = vmatpush1.msra.mxu0 %v82
      %107 = vmatprep.subr.mxu0 0.0
      %108 = vmatpush1.msra.mxu0 %v83
      %109 = vmatprep.subr.mxu0 0.0
      %110 = vmatpush1.msra.mxu0 %v84
      %111 = vmatprep.subr.mxu0 0.0
      %112 = vmatpush1.msra.mxu0 %v85
      %113 = vmatprep.subr.mxu0 0.0
      %114 = vmatpush1.msra.mxu0 %v86
      %115 = vmatprep.subr.mxu0 0.0
      %116 = vmatpush1.msra.mxu0 %v87
      %117 = vmatprep.subr.mxu0 0.0
      %118 = vmatpush1.msra.mxu0 %v88
      %119 = vmatprep.subr.mxu0 0.0
      %120 = vmatpush1.msra.mxu0 %v89
      %121 = vmatprep.subr.mxu0 0.0
      %122 = vmatpush1.msra.mxu0 %v90
      %123 = vmatprep.subr.mxu0 0.0
      %124 = vmatpush1.msra.mxu0 0.0
      %125 = vmatprep.subr.mxu0 0.0
      %126 = vmatpush1.msra.mxu0 0.0
      %127 = vmatprep.subr.mxu0 0.0
      %128 = vmatpush1.msra.mxu0 0.0
      %129 = vmatprep.subr.mxu0 0.0
      %130 = vmatpush1.msra.mxu0 0.0
      %131 = vmatprep.subr.mxu0 0.0
      %132 = vmatpush1.msra.mxu0 0.0
      %133 = vmatprep.subr.mxu0 0.0
      %134 = vmatpush1.msra.mxu0 0.0
      %135 = vmatprep.subr.mxu0 0.0
      %136 = vmatpush1.msra.mxu0 0.0
      %137 = vmatprep.subr.mxu0 0.0
      %138 = vmatpush1.msra.mxu0 0.0
      %139 = vmatprep.subr.mxu0 0.0
      %140 = vmatpush1.msra.mxu0 0.0
      %141 = vmatprep.subr.mxu0 0.0
      %142 = vmatpush1.msra.mxu0 0.0
      %143 = vmatprep.subr.mxu0 0.0
      %144 = vmatpush1.msra.mxu0 0.0
      %145 = vmatprep.subr.mxu0 0.0
      %146 = vmatpush1.msra.mxu0 0.0
      %147 = vmatprep.subr.mxu0 0.0
      %148 = vmatpush1.msra.mxu0 0.0
      %149 = vmatprep.subr.mxu0 0.0
      %150 = vmatpush1.msra.mxu0 0.0
      %151 = vmatprep.subr.mxu0 0.0
      %152 = vmatpush1.msra.mxu0 0.0
      %153 = vmatprep.subr.mxu0 0.0
      %154 = vmatpush1.msra.mxu0 0.0
      %155 = vmatprep.mubr.f32.mxu0 0.0
      %156 = vmatmul.mubr.f32.gmra.mrb[0].mxu0 %v74
      %v157 = vpop.f32.mrb[0].mxu0
      %v158 = vadd.f32 0.0, %v157
      %v159 = vpop.f32.mrb[0].mxu0
      %160 = vdwg.mxu0
      %161 = vst [vmem:[#allocation8] sm:$0x3] %v158
    $region25: #{tpu_custom_call.1} parent=1 // pred_fallthru
      _
    // Predicated region
    $region26: #{tpu_custom_call.1} parent=1 // pred_check
      _
    $region27: #{tpu_custom_call.1} parent=1 // pred_check_branch
      %163 = sbr.rel (0) target = $region29
    $region28: #{tpu_custom_call.1} parent=1 // pred_region
      %s165 = ssub.s32 32, 32
      %166 = vsyncadd [#allocation5], %s165
      %s168 = sshll.u32 [#allocation8], 4
      %s169 = int_to_ptr.vmem [resolvable:$true] %s168
      %171 = dma.vmem_to_hbm [thread:$0]  %s169, 32, %s2, [#allocation5]
    $region29: #{tpu_custom_call.1} parent=1 // pred_fallthru
      _
    // Predicated region
    $region30: #{tpu_custom_call.1} parent=1 // pred_check
      _
    $region31: #{tpu_custom_call.1} parent=1 // pred_check_branch
      %173 = sbr.rel (0) target = $region33
    $region32: #{tpu_custom_call.1} parent=1 // pred_region
      %174 = dma.done [#allocation5], 32
    $region33: #{tpu_custom_call.1} parent=1 // pred_fallthru
      _
    %175 = vsyncpa [#allocation4], 1
    %176 = vsyncpa [#allocation7], 1
    %177 = vsyncpa [#allocation5], 1

</llo_original>
